<compile_context>
chip_gen: v6e
topology: v6e:2x2x1
jax: 0.10.0
libtpu: 0.0.40
codegen_flags: <defaults>
</compile_context>

<pallas_src>
import jax
import jax.numpy as jnp
from jax.experimental import pallas as pl
from jax.experimental.pallas import tpu as pltpu


def qnet_kernel(xt_ref, w1t_ref, b1t_ref, w2t_ref, b2t_ref, o_ref):
    # One batch tile per grid step; both layers fused, weights VMEM-resident.
    xt = xt_ref[...]                                                     # [n_obs, tb]
    ht = jnp.dot(w1t_ref[...], xt, preferred_element_type=jnp.float32)   # [hidden, tb] (MXU)
    ht = jnp.maximum(ht + b1t_ref[...], 0.0)                             # bias + ReLU (VPU, f32)
    ot = jnp.dot(w2t_ref[...], ht, preferred_element_type=jnp.float32)   # [out_rows, tb] (MXU)
    o_ref[...] = (ot + b2t_ref[...]).astype(o_ref.dtype)                 # lane-dense store


def qnet_forward(x, w1, b1, w2, b2, *, tile_b=2048):
    """x: [B, n_obs] f32 -> [B, n_actions] f32 (same math as the torch Qnet)."""
    B, n_obs = x.shape
    hidden = w1.shape[1]
    n_actions = w2.shape[1]

    # --- transposed ("batch-in-lanes") parameters ---------------------------
    w1t = jnp.transpose(w1)                             # [hidden, n_obs]
    b1t = b1.reshape(hidden, 1)                         # [hidden, 1]
    out_rows = max(8, ((n_actions + 7) // 8) * 8)       # pad n_actions to sublane multiple
    w2t = jnp.zeros((out_rows, hidden), w2.dtype).at[:n_actions, :].set(jnp.transpose(w2))
    b2t = jnp.zeros((out_rows, 1), b2.dtype).at[:n_actions, :].set(b2.reshape(n_actions, 1))

    # --- batch tile: lane-dense multiple of 128, padded batch ---------------
    tb = min(tile_b, ((B + 127) // 128) * 128)
    tb = max(128, ((tb + 127) // 128) * 128)
    B_pad = pl.cdiv(B, tb) * tb

    # v7x megacore: if everything would fit one grid step but the batch is big
    # enough, split into two tiles so both TensorCores get work.
    if B_pad // tb == 1 and B > 128:
        tb = ((pl.cdiv(B, 2) + 127) // 128) * 128
        B_pad = 2 * tb

    xt = jnp.transpose(x)                               # [n_obs, B]
    if B_pad != B:
        xt = jnp.pad(xt, ((0, 0), (0, B_pad - B)))      # zero-pad batch columns
    grid = (B_pad // tb,)

    flops = 2 * B_pad * (n_obs * hidden + hidden * out_rows)
    bytes_accessed = 4 * (n_obs * B_pad + hidden * n_obs + hidden
                          + out_rows * hidden + out_rows + out_rows * B_pad)

    compiler_kwargs = dict(dimension_semantics=("parallel",))   # megacore on v7x
    if tb >= 8192:
        # Insurance for v5e's 16 MiB scoped-VMEM default at very large tiles.
        compiler_kwargs["vmem_limit_bytes"] = 64 * 1024 * 1024

    out_t = pl.pallas_call(
        qnet_kernel,
        out_shape=jax.ShapeDtypeStruct((out_rows, B_pad), jnp.float32),
        grid=grid,
        in_specs=[
            pl.BlockSpec((n_obs, tb), lambda i: (0, i)),       # x^T: tiled over batch lanes
            pl.BlockSpec((hidden, n_obs), lambda i: (0, 0)),   # w1^T: resident
            pl.BlockSpec((hidden, 1), lambda i: (0, 0)),       # b1^T: resident
            pl.BlockSpec((out_rows, hidden), lambda i: (0, 0)),  # w2^T (padded): resident
            pl.BlockSpec((out_rows, 1), lambda i: (0, 0)),     # b2^T (padded): resident
        ],
        out_specs=pl.BlockSpec((out_rows, tb), lambda i: (0, i)),
        compiler_params=pltpu.CompilerParams(**compiler_kwargs),
        cost_estimate=pl.CostEstimate(
            flops=flops, transcendentals=0, bytes_accessed=bytes_accessed),
    )(xt, w1t, b1t, w2t, b2t)

    # Strip row (action) and column (batch) padding outside the kernel.
    return jnp.transpose(out_t[:n_actions, :B])


def init_qnet_params(key, n_observations, n_actions, hidden=128):
    """Deterministic synthetic init (uniform fan-in bound, like torch's default)."""
    k1, k2, k3, k4 = jax.random.split(key, 4)
    bound1 = 1.0 / jnp.sqrt(n_observations)
    bound2 = 1.0 / jnp.sqrt(hidden)
    w1 = jax.random.uniform(k1, (n_observations, hidden), jnp.float32, -bound1, bound1)
    b1 = jax.random.uniform(k2, (1, hidden), jnp.float32, -bound1, bound1)
    w2 = jax.random.uniform(k3, (hidden, n_actions), jnp.float32, -bound2, bound2)
    b2 = jax.random.uniform(k4, (1, n_actions), jnp.float32, -bound2, bound2)
    return w1, b1, w2, b2


def _ref_forward(x, w1, b1, w2, b2):
    return jnp.maximum(x @ w1 + b1, 0.0) @ w2 + b2


if __name__ == "__main__":
    # Small shapes consistent with a DQN Qnet: 4-dim observations, 2 actions.
    n_observations, n_actions = 4, 2

    key = jax.random.PRNGKey(0)
    kx1, kx2, kx3, kp = jax.random.split(key, 4)
    w1, b1, w2, b2 = init_qnet_params(kp, n_observations, n_actions)

    # Case 1: tiny batch (acting path) — single 128-wide padded tile.
    x_small = jax.random.normal(kx1, (4, n_observations), jnp.float32)
    out_small = jax.block_until_ready(qnet_forward(x_small, w1, b1, w2, b2))
    ref_small = _ref_forward(x_small, w1, b1, w2, b2)
    assert out_small.shape == (4, n_actions)
    assert jnp.allclose(out_small, ref_small, atol=1e-5, rtol=1e-5)

    # Case 2: ragged minibatch, default tile — exercises the 2-way v7x split.
    x_mid = jax.random.normal(kx2, (300, n_observations), jnp.float32)
    out_mid = jax.block_until_ready(qnet_forward(x_mid, w1, b1, w2, b2))
    ref_mid = _ref_forward(x_mid, w1, b1, w2, b2)
    assert out_mid.shape == (300, n_actions)
    assert jnp.allclose(out_mid, ref_mid, atol=1e-5, rtol=1e-5)

    # Case 3: explicit small tile — exercises the multi-step batch grid.
    x_big = jax.random.normal(kx3, (300, n_observations), jnp.float32)
    out_big = jax.block_until_ready(qnet_forward(x_big, w1, b1, w2, b2, tile_b=128))
    ref_big = _ref_forward(x_big, w1, b1, w2, b2)
    assert out_big.shape == (300, n_actions)
    assert jnp.allclose(out_big, ref_big, atol=1e-5, rtol=1e-5)

    print("KERNEL_OK")
</pallas_src>

<mosaic_0001>
module attributes {stable_mosaic.version = 11 : i64} {
  func.func @qnet_kernel(%arg0: i32, %arg1: memref<4x128xf32, #tpu.memory_space<vmem>>, %arg2: memref<128x4xf32, #tpu.memory_space<vmem>>, %arg3: memref<128x1xf32, #tpu.memory_space<vmem>>, %arg4: memref<8x128xf32, #tpu.memory_space<vmem>>, %arg5: memref<8x1xf32, #tpu.memory_space<vmem>>, %arg6: memref<8x128xf32, #tpu.memory_space<vmem>>) attributes {dimension_semantics = [#tpu.dimension_semantics<parallel>], iteration_bounds = array<i64: 1>, scalar_prefetch = 0 : i64, scratch_operands = 0 : i64, tpu.core_type = #tpu.core_type<tc>, window_params = [{transform_indices = @transform_0, window_bounds = array<i64: 4, 128>}, {pipeline_mode = #tpu.pipeline_mode<synchronous>, transform_indices = @transform_1, window_bounds = array<i64: 128, 4>}, {pipeline_mode = #tpu.pipeline_mode<synchronous>, transform_indices = @transform_2, window_bounds = array<i64: 128, 1>}, {pipeline_mode = #tpu.pipeline_mode<synchronous>, transform_indices = @transform_3, window_bounds = array<i64: 8, 128>}, {pipeline_mode = #tpu.pipeline_mode<synchronous>, transform_indices = @transform_4, window_bounds = array<i64: 8, 1>}, {transform_indices = @transform_5, window_bounds = array<i64: 8, 128>}]} {
    %c0 = arith.constant 0 : index
    %c0_0 = arith.constant 0 : index
    %0 = vector.load %arg1[%c0, %c0_0] : memref<4x128xf32, #tpu.memory_space<vmem>>, vector<4x128xf32>
    %c0_1 = arith.constant 0 : index
    %c0_2 = arith.constant 0 : index
    %1 = vector.load %arg2[%c0_1, %c0_2] : memref<128x4xf32, #tpu.memory_space<vmem>>, vector<128x4xf32>
    %cst = arith.constant dense<0.000000e+00> : vector<128x128xf32>
    %2 = tpu.matmul %1, %0, %cst {dimension_numbers = #tpu.dot_dimension_numbers<[1], [0], [0], [1], [0, 0, 1, 1], [], []>} : vector<128x4xf32>, vector<4x128xf32>, vector<128x128xf32> -> vector<128x128xf32>
    %c0_3 = arith.constant 0 : index
    %c0_4 = arith.constant 0 : index
    %3 = vector.load %arg3[%c0_3, %c0_4] : memref<128x1xf32, #tpu.memory_space<vmem>>, vector<128x1xf32>
    %4 = vector.broadcast %3 : vector<128x1xf32> to vector<128x128xf32>
    %5 = arith.addf %2, %4 : vector<128x128xf32>
    %cst_5 = arith.constant 0.000000e+00 : f32
    %6 = vector.broadcast %cst_5 : f32 to vector<128x128xf32>
    %7 = arith.maximumf %5, %6 : vector<128x128xf32>
    %c0_6 = arith.constant 0 : index
    %c0_7 = arith.constant 0 : index
    %8 = vector.load %arg4[%c0_6, %c0_7] : memref<8x128xf32, #tpu.memory_space<vmem>>, vector<8x128xf32>
    %cst_8 = arith.constant dense<0.000000e+00> : vector<8x128xf32>
    %9 = tpu.matmul %8, %7, %cst_8 {dimension_numbers = #tpu.dot_dimension_numbers<[1], [0], [0], [1], [0, 0, 1, 1], [], []>} : vector<8x128xf32>, vector<128x128xf32>, vector<8x128xf32> -> vector<8x128xf32>
    %c0_9 = arith.constant 0 : index
    %c0_10 = arith.constant 0 : index
    %10 = vector.load %arg5[%c0_9, %c0_10] : memref<8x1xf32, #tpu.memory_space<vmem>>, vector<8x1xf32>
    %11 = vector.broadcast %10 : vector<8x1xf32> to vector<8x128xf32>
    %12 = arith.addf %9, %11 : vector<8x128xf32>
    %c0_11 = arith.constant 0 : index
    %c0_12 = arith.constant 0 : index
    %13 = vector.load %arg6[%c0_11, %c0_12] : memref<8x128xf32, #tpu.memory_space<vmem>>, vector<8x128xf32>
    tpu.vector_store %arg6[%c0_11, %c0_12], %12 {strides = array<i32>} : memref<8x128xf32, #tpu.memory_space<vmem>>, vector<8x128xf32>,
    return
  }
  func.func @transform_0(%arg0: i32) -> (i32, i32) {
    %c0_i32 = arith.constant 0 : i32
    %c0_i32_0 = arith.constant 0 : i32
    return %c0_i32, %arg0 : i32, i32
  }
  func.func @transform_1(%arg0: i32) -> (i32, i32) {
    %c0_i32 = arith.constant 0 : i32
    %c0_i32_0 = arith.constant 0 : i32
    %c0_i32_1 = arith.constant 0 : i32
    return %c0_i32, %c0_i32_0 : i32, i32
  }
  func.func @transform_2(%arg0: i32) -> (i32, i32) {
    %c0_i32 = arith.constant 0 : i32
    %c0_i32_0 = arith.constant 0 : i32
    %c0_i32_1 = arith.constant 0 : i32
    return %c0_i32, %c0_i32_0 : i32, i32
  }
  func.func @transform_3(%arg0: i32) -> (i32, i32) {
    %c0_i32 = arith.constant 0 : i32
    %c0_i32_0 = arith.constant 0 : i32
    %c0_i32_1 = arith.constant 0 : i32
    return %c0_i32, %c0_i32_0 : i32, i32
  }
  func.func @transform_4(%arg0: i32) -> (i32, i32) {
    %c0_i32 = arith.constant 0 : i32
    %c0_i32_0 = arith.constant 0 : i32
    %c0_i32_1 = arith.constant 0 : i32
    return %c0_i32, %c0_i32_0 : i32, i32
  }
  func.func @transform_5(%arg0: i32) -> (i32, i32) {
    %c0_i32 = arith.constant 0 : i32
    %c0_i32_0 = arith.constant 0 : i32
    return %c0_i32, %arg0 : i32, i32
  }
}

</mosaic_0001>

<llo_original>
// kernel: tpu_custom_call.1
$region0: #{tpu_custom_call.1}
  #allocation0 [shape = 'u32[]', space=smem, size = 0x4, offset = 0x4, fixed_abs, tag = 'smem constant byte address 0x4 - core index']
  #allocation1 [shape = 'u32[144,128]{1,0:T(1,128)}', space=vmem, size = 0x12000, scoped, tag = 'internal scratch']
  %s0 = inlined_call_operand.vmem [shape: f32[4,128], index: 0, kind: input, shape index: {}]
  %s1 = inlined_call_operand.vmem [shape: f32[128,4], index: 1, kind: input, shape index: {}]
  %s2 = inlined_call_operand.vmem [shape: f32[128,1], index: 2, kind: input, shape index: {}]
  %s3 = inlined_call_operand.vmem [shape: f32[8,128], index: 3, kind: input, shape index: {}]
  %s4 = inlined_call_operand.vmem [shape: f32[8,1], index: 4, kind: input, shape index: {}]
  %s5 = inlined_call_operand.hbm [shape: f32[8,128], index: 5, kind: output, shape index: {}]
  %s6 = sld [smem:[#allocation0]]
  $region30: #{tpu_custom_call.1} parent=0
    _
  %s8 = ssub.s32 1, %s6
  %s9 = scalar_select 0, %s8, %s6
  $region1: #{tpu_custom_call.1} parent=0
    #allocation2 [shape = 'u8[4096]{0}', space=vmem, size = 0x1000, scoped, tag = 'output window, operand 0, single buffered']
    #allocation3 [shape = 's32[1]{0}', space=sflag, size = 0x4, scoped, tag = 'scoped memory for tpu_custom_call.1']
    %10 = vsyncpa [#allocation3], 0
    // Predicated region
    $region2: #{tpu_custom_call.1} parent=1 // pred_check
      _
    $region3: #{tpu_custom_call.1} parent=1 // pred_check_branch
      %12 = sbr.rel (0) target = $region5
    $region4: #{tpu_custom_call.1} parent=1 // pred_region
      _
    $region5: #{tpu_custom_call.1} parent=1 // pred_fallthru
      _
    // Predicated region
    $region6: #{tpu_custom_call.1} parent=1 // pred_check
      _
    $region7: #{tpu_custom_call.1} parent=1 // pred_check_branch
      %14 = sbr.rel (0) target = $region9
    $region8: #{tpu_custom_call.1} parent=1 // pred_region
      _
    $region9: #{tpu_custom_call.1} parent=1 // pred_fallthru
      _
    // Predicated region
    $region10: #{tpu_custom_call.1} parent=1 // pred_check
      _
    $region11: #{tpu_custom_call.1} parent=1 // pred_check_branch
      %16 = sbr.rel (0) target = $region13
    $region12: #{tpu_custom_call.1} parent=1 // pred_region
      _
    $region13: #{tpu_custom_call.1} parent=1 // pred_fallthru
      _
    // Predicated region
    $region14: #{tpu_custom_call.1} parent=1 // pred_check
      _
    $region15: #{tpu_custom_call.1} parent=1 // pred_check_branch
      %18 = sbr.rel (0) target = $region17
    $region16: #{tpu_custom_call.1} parent=1 // pred_region
      _
    $region17: #{tpu_custom_call.1} parent=1 // pred_fallthru
      _
    // Predicated region
    $region18: #{tpu_custom_call.1} parent=1 // pred_check
      _
    $region19: #{tpu_custom_call.1} parent=1 // pred_check_branch
      %20 = sbr.rel (0) target = $region21
    $region20: #{tpu_custom_call.1} parent=1 // pred_region
      _
    $region21: #{tpu_custom_call.1} parent=1 // pred_fallthru
      _
    %v21 = vld [vmem:[%s0] sm:$0xf]
    %v22 = vld [vmem:[%s1] sm:$0xff]
    %v23 = vld [vmem:[%s1 + $0x8] sm:$0xff]
    %v24 = vld [vmem:[%s1 + $0x10] sm:$0xff]
    %v25 = vld [vmem:[%s1 + $0x18] sm:$0xff]
    %v26 = vld [vmem:[%s1 + $0x20] sm:$0xff]
    %v27 = vld [vmem:[%s1 + $0x28] sm:$0xff]
    %v28 = vld [vmem:[%s1 + $0x30] sm:$0xff]
    %v29 = vld [vmem:[%s1 + $0x38] sm:$0xff]
    %v30 = vld [vmem:[%s1 + $0x40] sm:$0xff]
    %v31 = vld [vmem:[%s1 + $0x48] sm:$0xff]
    %v32 = vld [vmem:[%s1 + $0x50] sm:$0xff]
    %v33 = vld [vmem:[%s1 + $0x58] sm:$0xff]
    %v34 = vld [vmem:[%s1 + $0x60] sm:$0xff]
    %v35 = vld [vmem:[%s1 + $0x68] sm:$0xff]
    %v36 = vld [vmem:[%s1 + $0x70] sm:$0xff]
    %v37 = vld [vmem:[%s1 + $0x78] sm:$0xff]
    %v38 = vld [vmem:[%s2] sm:$0xff]
    %v39 = vld [vmem:[%s2 + $0x8] sm:$0xff]
    %v40 = vld [vmem:[%s2 + $0x10] sm:$0xff]
    %v41 = vld [vmem:[%s2 + $0x18] sm:$0xff]
    %v42 = vld [vmem:[%s2 + $0x20] sm:$0xff]
    %v43 = vld [vmem:[%s2 + $0x28] sm:$0xff]
    %v44 = vld [vmem:[%s2 + $0x30] sm:$0xff]
    %v45 = vld [vmem:[%s2 + $0x38] sm:$0xff]
    %v46 = vld [vmem:[%s2 + $0x40] sm:$0xff]
    %v47 = vld [vmem:[%s2 + $0x48] sm:$0xff]
    %v48 = vld [vmem:[%s2 + $0x50] sm:$0xff]
    %v49 = vld [vmem:[%s2 + $0x58] sm:$0xff]
    %v50 = vld [vmem:[%s2 + $0x60] sm:$0xff]
    %v51 = vld [vmem:[%s2 + $0x68] sm:$0xff]
    %v52 = vld [vmem:[%s2 + $0x70] sm:$0xff]
    %v53 = vld [vmem:[%s2 + $0x78] sm:$0xff]
    %55 = vset.pattern.permute.xlu0 0
    %56 = vperm.xlu0 %55, %v38
    %v57 = vpop.permute.xlu0 %56
    %60 = vset.pattern.permute.xlu0 0
    %61 = vperm.xlu0 %60, %v39
    %v62 = vpop.permute.xlu0 %61
    %65 = vset.pattern.permute.xlu0 0
    %66 = vperm.xlu0 %65, %v40
    %v67 = vpop.permute.xlu0 %66
    %70 = vset.pattern.permute.xlu0 0
    %71 = vperm.xlu0 %70, %v41
    %v72 = vpop.permute.xlu0 %71
    %75 = vset.pattern.permute.xlu0 0
    %76 = vperm.xlu0 %75, %v42
    %v77 = vpop.permute.xlu0 %76
    %80 = vset.pattern.permute.xlu0 0
    %81 = vperm.xlu0 %80, %v43
    %v82 = vpop.permute.xlu0 %81
    %85 = vset.pattern.permute.xlu0 0
    %86 = vperm.xlu0 %85, %v44
    %v87 = vpop.permute.xlu0 %86
    %90 = vset.pattern.permute.xlu0 0
    %91 = vperm.xlu0 %90, %v45
    %v92 = vpop.permute.xlu0 %91
    %95 = vset.pattern.permute.xlu0 0
    %96 = vperm.xlu0 %95, %v46
    %v97 = vpop.permute.xlu0 %96
    %100 = vset.pattern.permute.xlu0 0
    %101 = vperm.xlu0 %100, %v47
    %v102 = vpop.permute.xlu0 %101
    %105 = vset.pattern.permute.xlu0 0
    %106 = vperm.xlu0 %105, %v48
    %v107 = vpop.permute.xlu0 %106
    %110 = vset.pattern.permute.xlu0 0
    %111 = vperm.xlu0 %110, %v49
    %v112 = vpop.permute.xlu0 %111
    %115 = vset.pattern.permute.xlu0 0
    %116 = vperm.xlu0 %115, %v50
    %v117 = vpop.permute.xlu0 %116
    %120 = vset.pattern.permute.xlu0 0
    %121 = vperm.xlu0 %120, %v51
    %v122 = vpop.permute.xlu0 %121
    %125 = vset.pattern.permute.xlu0 0
    %126 = vperm.xlu0 %125, %v52
    %v127 = vpop.permute.xlu0 %126
    %130 = vset.pattern.permute.xlu0 0
    %131 = vperm.xlu0 %130, %v53
    %v132 = vpop.permute.xlu0 %131
    %vm134 = vcmask 31744
    %v136 = vsel %vm134, %v22, 0
    %v139 = vsel %vm134, %v23, 0
    %v142 = vsel %vm134, %v24, 0
    %v145 = vsel %vm134, %v25, 0
    %v148 = vsel %vm134, %v26, 0
    %v151 = vsel %vm134, %v27, 0
    %v154 = vsel %vm134, %v28, 0
    %v157 = vsel %vm134, %v29, 0
    %v160 = vsel %vm134, %v30, 0
    %v163 = vsel %vm134, %v31, 0
    %v166 = vsel %vm134, %v32, 0
    %v169 = vsel %vm134, %v33, 0
    %v172 = vsel %vm134, %v34, 0
    %v175 = vsel %vm134, %v35, 0
    %v178 = vsel %vm134, %v36, 0
    %v181 = vsel %vm134, %v37, 0
    %vm183 = vcmask 1043456
    %v185 = vsel %vm183, %v21, 0
    %187 = vmatprep.subr.mxu0 0.0
    %188 = vmatpush1.msra.mxu0 0.0
    %189 = vmatprep.subr.mxu0 0.0
    %190 = vmatpush1.msra.mxu0 0.0
    %191 = vmatprep.subr.mxu0 0.0
    %192 = vmatpush1.msra.mxu0 0.0
    %193 = vmatprep.subr.mxu0 0.0
    %194 = vmatpush1.msra.mxu0 0.0
    %195 = vmatprep.subr.mxu0 0.0
    %196 = vmatpush1.msra.mxu0 0.0
    %197 = vmatprep.subr.mxu0 0.0
    %198 = vmatpush1.msra.mxu0 0.0
    %199 = vmatprep.subr.mxu0 0.0
    %200 = vmatpush1.msra.mxu0 0.0
    %201 = vmatprep.subr.mxu0 0.0
    %202 = vmatpush1.msra.mxu0 0.0
    %203 = vmatprep.subr.mxu0 0.0
    %204 = vmatpush1.msra.mxu0 0.0
    %205 = vmatprep.subr.mxu0 0.0
    %206 = vmatpush1.msra.mxu0 0.0
    %207 = vmatprep.subr.mxu0 0.0
    %208 = vmatpush1.msra.mxu0 0.0
    %209 = vmatprep.subr.mxu0 0.0
    %210 = vmatpush1.msra.mxu0 0.0
    %211 = vmatprep.subr.mxu0 0.0
    %212 = vmatpush1.msra.mxu0 0.0
    %213 = vmatprep.subr.mxu0 0.0
    %214 = vmatpush1.msra.mxu0 0.0
    %215 = vmatprep.subr.mxu0 0.0
    %216 = vmatpush1.msra.mxu0 0.0
    %217 = vmatprep.subr.mxu0 0.0
    %218 = vmatpush1.msra.mxu0 %v185
    %219 = vmatprep.subr.mxu0 0.0
    %220 = vmatpush2.msra.mxu0 0.0
    %221 = vmatprep.subr.mxu0 0.0
    %222 = vmatpush2.msra.mxu0 0.0
    %223 = vmatprep.subr.mxu0 0.0
    %224 = vmatpush2.msra.mxu0 0.0
    %225 = vmatprep.subr.mxu0 0.0
    %226 = vmatpush2.msra.mxu0 0.0
    %227 = vmatprep.subr.mxu0 0.0
    %228 = vmatpush2.msra.mxu0 0.0
    %229 = vmatprep.subr.mxu0 0.0
    %230 = vmatpush2.msra.mxu0 0.0
    %231 = vmatprep.subr.mxu0 0.0
    %232 = vmatpush2.msra.mxu0 0.0
    %233 = vmatprep.subr.mxu0 0.0
    %234 = vmatpush2.msra.mxu0 0.0
    %235 = vmatprep.subr.mxu0 0.0
    %236 = vmatpush2.msra.mxu0 0.0
    %237 = vmatprep.subr.mxu0 0.0
    %238 = vmatpush2.msra.mxu0 0.0
    %239 = vmatprep.subr.mxu0 0.0
    %240 = vmatpush2.msra.mxu0 0.0
    %241 = vmatprep.subr.mxu0 0.0
    %242 = vmatpush2.msra.mxu0 0.0
    %243 = vmatprep.subr.mxu0 0.0
    %244 = vmatpush2.msra.mxu0 0.0
    %245 = vmatprep.subr.mxu0 0.0
    %246 = vmatpush2.msra.mxu0 0.0
    %247 = vmatprep.subr.mxu0 0.0
    %248 = vmatpush2.msra.mxu0 0.0
    %249 = vmatprep.subr.mxu0 0.0
    %250 = vmatpush2.msra.mxu0 0.0
    %251 = vmatprep.mubr.f32.mxu0 0.0
    %252 = vmatmul.mubr.f32.gmra.mxu0 %v136
    %v253 = vpop.f32.mrf.mxu0
    %v254 = vadd.f32 %v57, %v253
    %v255 = vpop.f32.mrf.mxu0
    %256 = vmatprep.mubr.f32.mxu0 0.0
    %257 = vmatmul.mubr.f32.gmra.mxu0 %v139
    %v258 = vpop.f32.mrf.mxu0
    %v259 = vadd.f32 %v62, %v258
    %v260 = vpop.f32.mrf.mxu0
    %261 = vmatprep.mubr.f32.mxu0 0.0
    %262 = vmatmul.mubr.f32.gmra.mxu0 %v142
    %v263 = vpop.f32.mrf.mxu0
    %v264 = vadd.f32 %v67, %v263
    %v265 = vpop.f32.mrf.mxu0
    %266 = vmatprep.mubr.f32.mxu0 0.0
    %267 = vmatmul.mubr.f32.gmra.mxu0 %v145
    %v268 = vpop.f32.mrf.mxu0
    %v269 = vadd.f32 %v72, %v268
    %v270 = vpop.f32.mrf.mxu0
    %271 = vmatprep.mubr.f32.mxu0 0.0
    %272 = vmatmul.mubr.f32.gmra.mxu0 %v148
    %v273 = vpop.f32.mrf.mxu0
    %v274 = vadd.f32 %v77, %v273
    %v275 = vpop.f32.mrf.mxu0
    %276 = vmatprep.mubr.f32.mxu0 0.0
    %277 = vmatmul.mubr.f32.gmra.mxu0 %v151
    %v278 = vpop.f32.mrf.mxu0
    %v279 = vadd.f32 %v82, %v278
    %v280 = vpop.f32.mrf.mxu0
    %281 = vmatprep.mubr.f32.mxu0 0.0
    %282 = vmatmul.mubr.f32.gmra.mxu0 %v154
    %v283 = vpop.f32.mrf.mxu0
    %v284 = vadd.f32 %v87, %v283
    %v285 = vpop.f32.mrf.mxu0
    %286 = vmatprep.mubr.f32.mxu0 0.0
    %287 = vmatmul.mubr.f32.gmra.mxu0 %v157
    %v288 = vpop.f32.mrf.mxu0
    %v289 = vadd.f32 %v92, %v288
    %v290 = vpop.f32.mrf.mxu0
    %291 = vmatprep.mubr.f32.mxu0 0.0
    %292 = vmatmul.mubr.f32.gmra.mxu0 %v160
    %v293 = vpop.f32.mrf.mxu0
    %v294 = vadd.f32 %v97, %v293
    %v295 = vpop.f32.mrf.mxu0
    %296 = vmatprep.mubr.f32.mxu0 0.0
    %297 = vmatmul.mubr.f32.gmra.mxu0 %v163
    %v298 = vpop.f32.mrf.mxu0
    %v299 = vadd.f32 %v102, %v298
    %v300 = vpop.f32.mrf.mxu0
    %301 = vmatprep.mubr.f32.mxu0 0.0
    %302 = vmatmul.mubr.f32.gmra.mxu0 %v166
    %v303 = vpop.f32.mrf.mxu0
    %v304 = vadd.f32 %v107, %v303
    %v305 = vpop.f32.mrf.mxu0
    %306 = vmatprep.mubr.f32.mxu0 0.0
    %307 = vmatmul.mubr.f32.gmra.mxu0 %v169
    %v308 = vpop.f32.mrf.mxu0
    %v309 = vadd.f32 %v112, %v308
    %v310 = vpop.f32.mrf.mxu0
    %311 = vmatprep.mubr.f32.mxu0 0.0
    %312 = vmatmul.mubr.f32.gmra.mxu0 %v172
    %v313 = vpop.f32.mrf.mxu0
    %v314 = vadd.f32 %v117, %v313
    %v315 = vpop.f32.mrf.mxu0
    %316 = vmatprep.mubr.f32.mxu0 0.0
    %317 = vmatmul.mubr.f32.gmra.mxu0 %v175
    %v318 = vpop.f32.mrf.mxu0
    %v319 = vadd.f32 %v122, %v318
    %v320 = vpop.f32.mrf.mxu0
    %321 = vmatprep.mubr.f32.mxu0 0.0
    %322 = vmatmul.mubr.f32.gmra.mxu0 %v178
    %v323 = vpop.f32.mrf.mxu0
    %v324 = vadd.f32 %v127, %v323
    %v325 = vpop.f32.mrf.mxu0
    %326 = vmatprep.mubr.f32.mxu0 0.0
    %327 = vmatmul.mubr.f32.gmra.mxu0 %v181
    %v328 = vpop.f32.mrf.mxu0
    %v329 = vadd.f32 %v132, %v328
    %v330 = vpop.f32.mrf.mxu0
    %331 = vdwg.mxu0
    %v332 = vmax.f32 %v254, 0.0
    %v333 = vmax.f32 %v259, 0.0
    %v334 = vmax.f32 %v264, 0.0
    %v335 = vmax.f32 %v269, 0.0
    %v336 = vmax.f32 %v274, 0.0
    %v337 = vmax.f32 %v279, 0.0
    %v338 = vmax.f32 %v284, 0.0
    %v339 = vmax.f32 %v289, 0.0
    %v340 = vmax.f32 %v294, 0.0
    %v341 = vmax.f32 %v299, 0.0
    %v342 = vmax.f32 %v304, 0.0
    %v343 = vmax.f32 %v309, 0.0
    %v344 = vmax.f32 %v314, 0.0
    %v345 = vmax.f32 %v319, 0.0
    %v346 = vmax.f32 %v324, 0.0
    %v347 = vmax.f32 %v329, 0.0
    %v348 = vld [vmem:[%s3] sm:$0xff]
    %v349 = vld [vmem:[%s4] sm:$0xff]
    %351 = vset.pattern.permute.xlu0 0
    %352 = vperm.xlu0 %351, %v349
    %v353 = vpop.permute.xlu0 %352
    %355 = vmatprep.subr.mxu0 0.0
    %356 = vmatpush1.msra.mxu0 %v347
    %357 = vmatprep.subr.mxu0 0.0
    %358 = vmatpush1.msra.mxu0 %v346
    %359 = vmatprep.subr.mxu0 0.0
    %360 = vmatpush1.msra.mxu0 %v345
    %361 = vmatprep.subr.mxu0 0.0
    %362 = vmatpush1.msra.mxu0 %v344
    %363 = vmatprep.subr.mxu0 0.0
    %364 = vmatpush1.msra.mxu0 %v343
    %365 = vmatprep.subr.mxu0 0.0
    %366 = vmatpush1.msra.mxu0 %v342
    %367 = vmatprep.subr.mxu0 0.0
    %368 = vmatpush1.msra.mxu0 %v341
    %369 = vmatprep.subr.mxu0 0.0
    %370 = vmatpush1.msra.mxu0 %v340
    %371 = vmatprep.subr.mxu0 0.0
    %372 = vmatpush1.msra.mxu0 %v339
    %373 = vmatprep.subr.mxu0 0.0
    %374 = vmatpush1.msra.mxu0 %v338
    %375 = vmatprep.subr.mxu0 0.0
    %376 = vmatpush1.msra.mxu0 %v337
    %377 = vmatprep.subr.mxu0 0.0
    %378 = vmatpush1.msra.mxu0 %v336
    %379 = vmatprep.subr.mxu0 0.0
    %380 = vmatpush1.msra.mxu0 %v335
    %381 = vmatprep.subr.mxu0 0.0
    %382 = vmatpush1.msra.mxu0 %v334
    %383 = vmatprep.subr.mxu0 0.0
    %384 = vmatpush1.msra.mxu0 %v333
    %385 = vmatprep.subr.mxu0 0.0
    %386 = vmatpush1.msra.mxu0 %v332
    %387 = vmatprep.subr.mxu0 0.0
    %388 = vmatpush2.msra.mxu0 0.0
    %389 = vmatprep.subr.mxu0 0.0
    %390 = vmatpush2.msra.mxu0 0.0
    %391 = vmatprep.subr.mxu0 0.0
    %392 = vmatpush2.msra.mxu0 0.0
    %393 = vmatprep.subr.mxu0 0.0
    %394 = vmatpush2.msra.mxu0 0.0
    %395 = vmatprep.subr.mxu0 0.0
    %396 = vmatpush2.msra.mxu0 0.0
    %397 = vmatprep.subr.mxu0 0.0
    %398 = vmatpush2.msra.mxu0 0.0
    %399 = vmatprep.subr.mxu0 0.0
    %400 = vmatpush2.msra.mxu0 0.0
    %401 = vmatprep.subr.mxu0 0.0
    %402 = vmatpush2.msra.mxu0 0.0
    %403 = vmatprep.subr.mxu0 0.0
    %404 = vmatpush2.msra.mxu0 0.0
    %405 = vmatprep.subr.mxu0 0.0
    %406 = vmatpush2.msra.mxu0 0.0
    %407 = vmatprep.subr.mxu0 0.0
    %408 = vmatpush2.msra.mxu0 0.0
    %409 = vmatprep.subr.mxu0 0.0
    %410 = vmatpush2.msra.mxu0 0.0
    %411 = vmatprep.subr.mxu0 0.0
    %412 = vmatpush2.msra.mxu0 0.0
    %413 = vmatprep.subr.mxu0 0.0
    %414 = vmatpush2.msra.mxu0 0.0
    %415 = vmatprep.subr.mxu0 0.0
    %416 = vmatpush2.msra.mxu0 0.0
    %417 = vmatprep.subr.mxu0 0.0
    %418 = vmatpush2.msra.mxu0 0.0
    %419 = vmatprep.mubr.f32.mxu0 0.0
    %420 = vmatmul.mubr.f32.gmra.mxu0 %v348
    %v421 = vpop.f32.mrf.mxu0
    %v422 = vadd.f32 %v353, %v421
    %v423 = vpop.f32.mrf.mxu0
    %424 = vdwg.mxu0
    %425 = vst [vmem:[#allocation2] sm:$0xff] %v422
    // Predicated region
    $region22: #{tpu_custom_call.1} parent=1 // pred_check
      _
    $region23: #{tpu_custom_call.1} parent=1 // pred_check_branch
      %427 = sbr.rel (0) target = $region25
    $region24: #{tpu_custom_call.1} parent=1 // pred_region
      %s429 = ssub.s32 128, 128
      %430 = vsyncadd [#allocation3], %s429
      %s432 = sshll.u32 [#allocation2], 4
      %s433 = int_to_ptr.vmem [resolvable:$true] %s432
      %435 = dma.vmem_to_hbm [thread:$0]  %s433, 128, %s5, [#allocation3]
    $region25: #{tpu_custom_call.1} parent=1 // pred_fallthru
      _
    // Predicated region
    $region26: #{tpu_custom_call.1} parent=1 // pred_check
      _
    $region27: #{tpu_custom_call.1} parent=1 // pred_check_branch
      %437 = sbr.rel (0) target = $region29
    $region28: #{tpu_custom_call.1} parent=1 // pred_region
      %438 = dma.done [#allocation3], 128
    $region29: #{tpu_custom_call.1} parent=1 // pred_fallthru
      _
    %439 = vsyncpa [#allocation3], 1

</llo_original>
